<compile_context>
chip_gen: v7x
topology: tpu7x:2x2x1
jax: 0.10.0
libtpu: 0.0.40
codegen_flags: <defaults>
</compile_context>

<pallas_src>
import jax
import jax.numpy as jnp
from jax import lax
from jax.experimental import pallas as pl
from jax.experimental.pallas import tpu as pltpu

N_V = 200     # number of graph nodes (n_V in the module)
IN_F = 200    # GCN in_features
OUT_F = 100   # GCN out_features


def _round_up(x, m):
    return (x + m - 1) // m * m


def gcn_relu_kernel(a_ref, hw_ref, b_ref, o_ref):
    """out = relu(D^-1/2 (A+I) D^-1/2 @ (H W^T) + b), with eye/A_hat implicit."""
    a = a_ref[...]                                   # (N_P, N_P) bf16, 0/1 entries

    # deg_j = sum_i A[i, j] + 1   (PyTorch (A + I).sum(dim=0)), computed as an
    # (n,1) MXU matvec A^T @ ones so no lane<->sublane reshape / XLU reduce is
    # needed.  Zero-padded nodes get degree exactly 1 -> rsqrt stays finite.
    ones_col = jnp.ones((a.shape[0], 1), dtype=a.dtype)
    deg = lax.dot_general(a, ones_col,
                          dimension_numbers=(((0,), (0,)), ((), ())),
                          preferred_element_type=jnp.float32) + 1.0   # (N_P, 1)
    d = lax.rsqrt(deg)                               # (N_P, 1) f32, 1/sqrt(deg)

    # Fold the right D^{-1/2} into the narrow operand (no [n,n] scaling).
    x = d * hw_ref[...]                              # (N_P, OUT_P) f32
    xb = x.astype(jnp.bfloat16)

    # (A + I) @ x = A @ x + x  -- bf16 operands, f32 accumulation; the exact
    # f32 `x` carries the self-loop contribution.
    y = jnp.dot(a, xb, preferred_element_type=jnp.float32) + x       # (N_P, OUT_P)

    # Left D^{-1/2}, bias, ReLU.
    o_ref[...] = jnp.maximum(d * y + b_ref[...], 0.0).astype(o_ref.dtype)


def my_model1_forward(a, h0, w, b):
    """a: [N,N] f32 adjacency, h0: [N,F_in] f32, w: [F_out,F_in], b: [F_out]."""
    n = a.shape[0]
    out_f = w.shape[0]
    n_p = _round_up(n, 256)        # MXU / lane aligned node dim (200 -> 256)
    out_p = _round_up(out_f, 128)  # lane-dense output dim      (100 -> 128)

    # Re-association: (norm @ H) @ W^T + b == norm @ (H @ W^T) + b.
    # With the module's H = eye this dot is trivial; in general it is the
    # cheap [N, F_in] x [F_in, F_out] product done once outside the kernel.
    hw = jnp.dot(h0, w.T)                                      # (n, out_f) f32

    # Zero-pad to TPU-friendly shapes; padded nodes have zero rows/cols so they
    # do not perturb real-node degrees or propagation, and are sliced off below.
    a_p = jnp.zeros((n_p, n_p), jnp.bfloat16).at[:n, :n].set(a.astype(jnp.bfloat16))
    hw_p = jnp.zeros((n_p, out_p), jnp.float32).at[:n, :out_f].set(hw)
    b_p = jnp.zeros((1, out_p), jnp.float32).at[0, :out_f].set(b)

    out_padded = pl.pallas_call(
        gcn_relu_kernel,
        out_shape=jax.ShapeDtypeStruct((n_p, out_p), jnp.float32),
        grid=(1,),
        in_specs=[
            pl.BlockSpec((n_p, n_p), lambda i: (0, 0)),
            pl.BlockSpec((n_p, out_p), lambda i: (0, 0)),
            pl.BlockSpec((1, out_p), lambda i: (0, 0)),
        ],
        out_specs=pl.BlockSpec((n_p, out_p), lambda i: (0, 0)),
        compiler_params=pltpu.CompilerParams(
            dimension_semantics=("arbitrary",)),
    )(a_p, hw_p, b_p)

    return out_padded[:n, :out_f]


if __name__ == "__main__":
    key = jax.random.PRNGKey(0)
    k_a, k_w, k_b = jax.random.split(key, 3)

    # Deterministic synthetic dense adjacency (symmetric, 0/1, zero diagonal),
    # standing in for `torch.from_numpy(A.todense()).float()`.
    rand = jax.random.uniform(k_a, (N_V, N_V))
    adj = (rand < 0.05).astype(jnp.float32)
    adj = jnp.maximum(adj, adj.T)
    adj = adj * (1.0 - jnp.eye(N_V, dtype=jnp.float32))

    # nn.Linear(200, 100)-style uniform init.
    bound = 1.0 / (IN_F ** 0.5)
    w = jax.random.uniform(k_w, (OUT_F, IN_F), minval=-bound, maxval=bound,
                           dtype=jnp.float32)
    b = jax.random.uniform(k_b, (OUT_F,), minval=-bound, maxval=bound,
                           dtype=jnp.float32)

    # h0 = identity, matching `H = torch.eye(n_V)` in the reference script.
    h0 = jnp.eye(N_V, dtype=jnp.float32)

    fwd = jax.jit(my_model1_forward)
    out = jax.block_until_ready(fwd(adj, h0, w, b))
    assert out.shape == (N_V, OUT_F) and out.dtype == jnp.float32

    # Pure-jnp f32 reference (generous tolerance for the bf16 MXU operands).
    a_hat = adj + jnp.eye(N_V, dtype=jnp.float32)
    d_ref = 1.0 / jnp.sqrt(a_hat.sum(axis=0))
    norm = d_ref[:, None] * a_hat * d_ref[None, :]
    ref = jnp.maximum(norm @ h0 @ w.T + b, 0.0)
    assert jnp.allclose(out, ref, rtol=2e-2, atol=2e-3), \
        float(jnp.max(jnp.abs(out - ref)))

    print("KERNEL_OK")
</pallas_src>

<mosaic_0001>
module attributes {stable_mosaic.version = 11 : i64} {
  func.func @gcn_relu_kernel(%arg0: i32, %arg1: memref<256x256xbf16, #tpu.memory_space<vmem>>, %arg2: memref<256x128xf32, #tpu.memory_space<vmem>>, %arg3: memref<1x128xf32, #tpu.memory_space<vmem>>, %arg4: memref<256x128xf32, #tpu.memory_space<vmem>>) attributes {dimension_semantics = [#tpu.dimension_semantics<arbitrary>], iteration_bounds = array<i64: 1>, scalar_prefetch = 0 : i64, scratch_operands = 0 : i64, tpu.core_type = #tpu.core_type<tc>, window_params = [{pipeline_mode = #tpu.pipeline_mode<synchronous>, transform_indices = @transform_0, window_bounds = array<i64: 256, 256>}, {pipeline_mode = #tpu.pipeline_mode<synchronous>, transform_indices = @transform_1, window_bounds = array<i64: 256, 128>}, {pipeline_mode = #tpu.pipeline_mode<synchronous>, transform_indices = @transform_2, window_bounds = array<i64: 1, 128>}, {pipeline_mode = #tpu.pipeline_mode<synchronous>, transform_indices = @transform_3, window_bounds = array<i64: 256, 128>}]} {
    %c0 = arith.constant 0 : index
    %c0_0 = arith.constant 0 : index
    %0 = vector.load %arg1[%c0, %c0_0] : memref<256x256xbf16, #tpu.memory_space<vmem>>, vector<256x256xbf16>
    %cst = arith.constant 1.000000e+00 : bf16
    %1 = vector.broadcast %cst : bf16 to vector<256x1xbf16>
    %cst_1 = arith.constant dense<0.000000e+00> : vector<256x1xf32>
    %2 = tpu.matmul %0, %1, %cst_1 {dimension_numbers = #tpu.dot_dimension_numbers<[0], [0], [1], [1], [0, 1, 1, 1], [], []>} : vector<256x256xbf16>, vector<256x1xbf16>, vector<256x1xf32> -> vector<256x1xf32>
    %cst_2 = arith.constant 1.000000e+00 : f32
    %3 = vector.broadcast %cst_2 : f32 to vector<256x1xf32>
    %4 = arith.addf %2, %3 : vector<256x1xf32>
    %5 = math.rsqrt %4 : vector<256x1xf32>
    %c0_3 = arith.constant 0 : index
    %c0_4 = arith.constant 0 : index
    %6 = vector.load %arg2[%c0_3, %c0_4] : memref<256x128xf32, #tpu.memory_space<vmem>>, vector<256x128xf32>
    %7 = vector.broadcast %5 : vector<256x1xf32> to vector<256x128xf32>
    %8 = arith.mulf %7, %6 : vector<256x128xf32>
    %9 = arith.truncf %8 : vector<256x128xf32> to vector<256x128xbf16>
    %cst_5 = arith.constant dense<0.000000e+00> : vector<256x128xf32>
    %10 = tpu.matmul %0, %9, %cst_5 {dimension_numbers = #tpu.dot_dimension_numbers<[1], [0], [0], [1], [0, 0, 1, 1], [], []>} : vector<256x256xbf16>, vector<256x128xbf16>, vector<256x128xf32> -> vector<256x128xf32>
    %11 = arith.addf %10, %8 : vector<256x128xf32>
    %12 = vector.broadcast %5 : vector<256x1xf32> to vector<256x128xf32>
    %13 = arith.mulf %12, %11 : vector<256x128xf32>
    %c0_6 = arith.constant 0 : index
    %c0_7 = arith.constant 0 : index
    %14 = vector.load %arg3[%c0_6, %c0_7] : memref<1x128xf32, #tpu.memory_space<vmem>>, vector<1x128xf32>
    %15 = vector.broadcast %14 : vector<1x128xf32> to vector<256x128xf32>
    %16 = arith.addf %13, %15 : vector<256x128xf32>
    %cst_8 = arith.constant 0.000000e+00 : f32
    %17 = vector.broadcast %cst_8 : f32 to vector<256x128xf32>
    %18 = arith.maximumf %16, %17 : vector<256x128xf32>
    %c0_9 = arith.constant 0 : index
    %c0_10 = arith.constant 0 : index
    %19 = vector.load %arg4[%c0_9, %c0_10] : memref<256x128xf32, #tpu.memory_space<vmem>>, vector<256x128xf32>
    tpu.vector_store %arg4[%c0_9, %c0_10], %18 {strides = array<i32>} : memref<256x128xf32, #tpu.memory_space<vmem>>, vector<256x128xf32>,
    return
  }
  func.func @transform_0(%arg0: i32) -> (i32, i32) {
    %c0_i32 = arith.constant 0 : i32
    %c0_i32_0 = arith.constant 0 : i32
    %c0_i32_1 = arith.constant 0 : i32
    return %c0_i32, %c0_i32_0 : i32, i32
  }
  func.func @transform_1(%arg0: i32) -> (i32, i32) {
    %c0_i32 = arith.constant 0 : i32
    %c0_i32_0 = arith.constant 0 : i32
    %c0_i32_1 = arith.constant 0 : i32
    return %c0_i32, %c0_i32_0 : i32, i32
  }
  func.func @transform_2(%arg0: i32) -> (i32, i32) {
    %c0_i32 = arith.constant 0 : i32
    %c0_i32_0 = arith.constant 0 : i32
    %c0_i32_1 = arith.constant 0 : i32
    return %c0_i32, %c0_i32_0 : i32, i32
  }
  func.func @transform_3(%arg0: i32) -> (i32, i32) {
    %c0_i32 = arith.constant 0 : i32
    %c0_i32_0 = arith.constant 0 : i32
    %c0_i32_1 = arith.constant 0 : i32
    return %c0_i32, %c0_i32_0 : i32, i32
  }
}

</mosaic_0001>

<llo_original>
// kernel: my_model1_forward.1
$region0: #{my_model1_forward.1}
  #allocation0 [shape = 'u32[]', space=smem, size = 0x4, offset = 0x4, fixed_abs, tag = 'smem constant byte address 0x4 - core index']
  #allocation1 [shape = 'u32[144,128]{1,0:T(1,128)}', space=vmem, size = 0x12000, scoped, tag = 'internal scratch']
  %s0 = inlined_call_operand.vmem [shape: bf16[256,256], index: 0, kind: input, shape index: {}]
  %s1 = inlined_call_operand.vmem [shape: f32[256,128], index: 1, kind: input, shape index: {}]
  %s2 = inlined_call_operand.vmem [shape: f32[1,128], index: 2, kind: input, shape index: {}]
  %s3 = inlined_call_operand.vmem [shape: f32[256,128], index: 3, kind: output, shape index: {}]
  %s4 = sld [smem:[#allocation0]]
  $region22: #{my_model1_forward.1} parent=0
    _
  %s6 = ssub.s32 1, %s4
  %s7 = scalar_select 0, %s6, %s4
  // Predicated region
  $region2: #{my_model1_forward.1} parent=0 // pred_check
    _
  $region3: #{my_model1_forward.1} parent=0 // pred_check_branch
    %9 = sbr.rel (0) target = $region5
  $region4: #{my_model1_forward.1} parent=0 // pred_region
    _
  $region5: #{my_model1_forward.1} parent=0 // pred_fallthru
    _
  // Predicated region
  $region6: #{my_model1_forward.1} parent=0 // pred_check
    _
  $region7: #{my_model1_forward.1} parent=0 // pred_check_branch
    %11 = sbr.rel (0) target = $region9
  $region8: #{my_model1_forward.1} parent=0 // pred_region
    _
  $region9: #{my_model1_forward.1} parent=0 // pred_fallthru
    _
  // Predicated region
  $region10: #{my_model1_forward.1} parent=0 // pred_check
    _
  $region11: #{my_model1_forward.1} parent=0 // pred_check_branch
    %13 = sbr.rel (0) target = $region13
  $region12: #{my_model1_forward.1} parent=0 // pred_region
    _
  $region13: #{my_model1_forward.1} parent=0 // pred_fallthru
    _
  %v16 = vld [vmem:[%s0] sm:$0xff]
  %v17 = vld [vmem:[%s0 + $0x8] sm:$0xff]
  %v18 = vld [vmem:[%s0 + $0x10] sm:$0xff]
  %v19 = vld [vmem:[%s0 + $0x18] sm:$0xff]
  %v20 = vld [vmem:[%s0 + $0x20] sm:$0xff]
  %v21 = vld [vmem:[%s0 + $0x28] sm:$0xff]
  %v22 = vld [vmem:[%s0 + $0x30] sm:$0xff]
  %v23 = vld [vmem:[%s0 + $0x38] sm:$0xff]
  %v24 = vld [vmem:[%s0 + $0x40] sm:$0xff]
  %v25 = vld [vmem:[%s0 + $0x48] sm:$0xff]
  %v26 = vld [vmem:[%s0 + $0x50] sm:$0xff]
  %v27 = vld [vmem:[%s0 + $0x58] sm:$0xff]
  %v28 = vld [vmem:[%s0 + $0x60] sm:$0xff]
  %v29 = vld [vmem:[%s0 + $0x68] sm:$0xff]
  %v30 = vld [vmem:[%s0 + $0x70] sm:$0xff]
  %v31 = vld [vmem:[%s0 + $0x78] sm:$0xff]
  %v32 = vld [vmem:[%s0 + $0x80] sm:$0xff]
  %v33 = vld [vmem:[%s0 + $0x88] sm:$0xff]
  %v34 = vld [vmem:[%s0 + $0x90] sm:$0xff]
  %v35 = vld [vmem:[%s0 + $0x98] sm:$0xff]
  %v36 = vld [vmem:[%s0 + $0xa0] sm:$0xff]
  %v37 = vld [vmem:[%s0 + $0xa8] sm:$0xff]
  %v38 = vld [vmem:[%s0 + $0xb0] sm:$0xff]
  %v39 = vld [vmem:[%s0 + $0xb8] sm:$0xff]
  %v40 = vld [vmem:[%s0 + $0xc0] sm:$0xff]
  %v41 = vld [vmem:[%s0 + $0xc8] sm:$0xff]
  %v42 = vld [vmem:[%s0 + $0xd0] sm:$0xff]
  %v43 = vld [vmem:[%s0 + $0xd8] sm:$0xff]
  %v44 = vld [vmem:[%s0 + $0xe0] sm:$0xff]
  %v45 = vld [vmem:[%s0 + $0xe8] sm:$0xff]
  %v46 = vld [vmem:[%s0 + $0xf0] sm:$0xff]
  %v47 = vld [vmem:[%s0 + $0xf8] sm:$0xff]
  %v80 = vunpack.c.l.b16 %v16
  %v81 = vunpack.c.h.b16 %v16
  %v82 = vunpack.c.l.b16 %v17
  %v83 = vunpack.c.h.b16 %v17
  %v84 = vunpack.c.l.b16 %v18
  %v85 = vunpack.c.h.b16 %v18
  %v86 = vunpack.c.l.b16 %v19
  %v87 = vunpack.c.h.b16 %v19
  %v88 = vunpack.c.l.b16 %v20
  %v89 = vunpack.c.h.b16 %v20
  %v90 = vunpack.c.l.b16 %v21
  %v91 = vunpack.c.h.b16 %v21
  %v92 = vunpack.c.l.b16 %v22
  %v93 = vunpack.c.h.b16 %v22
  %v94 = vunpack.c.l.b16 %v23
  %v95 = vunpack.c.h.b16 %v23
  %v96 = vunpack.c.l.b16 %v24
  %v97 = vunpack.c.h.b16 %v24
  %v98 = vunpack.c.l.b16 %v25
  %v99 = vunpack.c.h.b16 %v25
  %v100 = vunpack.c.l.b16 %v26
  %v101 = vunpack.c.h.b16 %v26
  %v102 = vunpack.c.l.b16 %v27
  %v103 = vunpack.c.h.b16 %v27
  %v104 = vunpack.c.l.b16 %v28
  %v105 = vunpack.c.h.b16 %v28
  %v106 = vunpack.c.l.b16 %v29
  %v107 = vunpack.c.h.b16 %v29
  %v108 = vunpack.c.l.b16 %v30
  %v109 = vunpack.c.h.b16 %v30
  %v110 = vunpack.c.l.b16 %v31
  %v111 = vunpack.c.h.b16 %v31
  %v112 = vunpack.c.l.b16 %v32
  %v113 = vunpack.c.h.b16 %v32
  %v114 = vunpack.c.l.b16 %v33
  %v115 = vunpack.c.h.b16 %v33
  %v116 = vunpack.c.l.b16 %v34
  %v117 = vunpack.c.h.b16 %v34
  %v118 = vunpack.c.l.b16 %v35
  %v119 = vunpack.c.h.b16 %v35
  %v120 = vunpack.c.l.b16 %v36
  %v121 = vunpack.c.h.b16 %v36
  %v122 = vunpack.c.l.b16 %v37
  %v123 = vunpack.c.h.b16 %v37
  %v124 = vunpack.c.l.b16 %v38
  %v125 = vunpack.c.h.b16 %v38
  %v126 = vunpack.c.l.b16 %v39
  %v127 = vunpack.c.h.b16 %v39
  %v128 = vunpack.c.l.b16 %v40
  %v129 = vunpack.c.h.b16 %v40
  %v130 = vunpack.c.l.b16 %v41
  %v131 = vunpack.c.h.b16 %v41
  %v132 = vunpack.c.l.b16 %v42
  %v133 = vunpack.c.h.b16 %v42
  %v134 = vunpack.c.l.b16 %v43
  %v135 = vunpack.c.h.b16 %v43
  %v136 = vunpack.c.l.b16 %v44
  %v137 = vunpack.c.h.b16 %v44
  %v138 = vunpack.c.l.b16 %v45
  %v139 = vunpack.c.h.b16 %v45
  %v140 = vunpack.c.l.b16 %v46
  %v141 = vunpack.c.h.b16 %v46
  %v142 = vunpack.c.l.b16 %v47
  %v143 = vunpack.c.h.b16 %v47
  %v144 = vpack.c.b16 %v82, %v80
  %v145 = vpack.c.b16 %v83, %v81
  %v146 = vpack.c.b16 %v86, %v84
  %v147 = vpack.c.b16 %v87, %v85
  %v148 = vpack.c.b16 %v90, %v88
  %v149 = vpack.c.b16 %v91, %v89
  %v150 = vpack.c.b16 %v94, %v92
  %v151 = vpack.c.b16 %v95, %v93
  %v152 = vpack.c.b16 %v98, %v96
  %v153 = vpack.c.b16 %v99, %v97
  %v154 = vpack.c.b16 %v102, %v100
  %v155 = vpack.c.b16 %v103, %v101
  %v156 = vpack.c.b16 %v106, %v104
  %v157 = vpack.c.b16 %v107, %v105
  %v158 = vpack.c.b16 %v110, %v108
  %v159 = vpack.c.b16 %v111, %v109
  %v160 = vpack.c.b16 %v114, %v112
  %v161 = vpack.c.b16 %v115, %v113
  %v162 = vpack.c.b16 %v118, %v116
  %v163 = vpack.c.b16 %v119, %v117
  %v164 = vpack.c.b16 %v122, %v120
  %v165 = vpack.c.b16 %v123, %v121
  %v166 = vpack.c.b16 %v126, %v124
  %v167 = vpack.c.b16 %v127, %v125
  %v168 = vpack.c.b16 %v130, %v128
  %v169 = vpack.c.b16 %v131, %v129
  %v170 = vpack.c.b16 %v134, %v132
  %v171 = vpack.c.b16 %v135, %v133
  %v172 = vpack.c.b16 %v138, %v136
  %v173 = vpack.c.b16 %v139, %v137
  %v174 = vpack.c.b16 %v142, %v140
  %v175 = vpack.c.b16 %v143, %v141
  %208 = vxpose.xlu0.c.b16.start [1/8] %v144, 128
  %209 = vxpose.xlu0.c.b16.cont [2/8] %v146, 128
  %210 = vxpose.xlu0.c.b16.cont [3/8] %v148, 128
  %211 = vxpose.xlu0.c.b16.cont [4/8] %v150, 128
  %212 = vxpose.xlu0.c.b16.cont [5/8] %v152, 128
  %213 = vxpose.xlu0.c.b16.cont [6/8] %v154, 128
  %214 = vxpose.xlu0.c.b16.cont [7/8] %v156, 128
  %215 = vxpose.xlu0.c.b16.end [8/8] %v158, 128
  %v216 = vpop.trf.xlu0
  %v217 = vpop.trf.xlu0
  %v218 = vpop.trf.xlu0
  %v219 = vpop.trf.xlu0
  %v220 = vpop.trf.xlu0
  %v221 = vpop.trf.xlu0
  %v222 = vpop.trf.xlu0
  %v223 = vpop.trf.xlu0
  %224 = vxpose.xlu0.c.b16.start [1/8] %v145, 128
  %225 = vxpose.xlu0.c.b16.cont [2/8] %v147, 128
  %226 = vxpose.xlu0.c.b16.cont [3/8] %v149, 128
  %227 = vxpose.xlu0.c.b16.cont [4/8] %v151, 128
  %228 = vxpose.xlu0.c.b16.cont [5/8] %v153, 128
  %229 = vxpose.xlu0.c.b16.cont [6/8] %v155, 128
  %230 = vxpose.xlu0.c.b16.cont [7/8] %v157, 128
  %231 = vxpose.xlu0.c.b16.end [8/8] %v159, 128
  %v232 = vpop.trf.xlu0
  %v233 = vpop.trf.xlu0
  %v234 = vpop.trf.xlu0
  %v235 = vpop.trf.xlu0
  %v236 = vpop.trf.xlu0
  %v237 = vpop.trf.xlu0
  %v238 = vpop.trf.xlu0
  %v239 = vpop.trf.xlu0
  %240 = vxpose.xlu0.c.b16.start [1/8] %v160, 128
  %241 = vxpose.xlu0.c.b16.cont [2/8] %v162, 128
  %242 = vxpose.xlu0.c.b16.cont [3/8] %v164, 128
  %243 = vxpose.xlu0.c.b16.cont [4/8] %v166, 128
  %244 = vxpose.xlu0.c.b16.cont [5/8] %v168, 128
  %245 = vxpose.xlu0.c.b16.cont [6/8] %v170, 128
  %246 = vxpose.xlu0.c.b16.cont [7/8] %v172, 128
  %247 = vxpose.xlu0.c.b16.end [8/8] %v174, 128
  %v248 = vpop.trf.xlu0
  %v249 = vpop.trf.xlu0
  %v250 = vpop.trf.xlu0
  %v251 = vpop.trf.xlu0
  %v252 = vpop.trf.xlu0
  %v253 = vpop.trf.xlu0
  %v254 = vpop.trf.xlu0
  %v255 = vpop.trf.xlu0
  %256 = vxpose.xlu0.c.b16.start [1/8] %v161, 128
  %257 = vxpose.xlu0.c.b16.cont [2/8] %v163, 128
  %258 = vxpose.xlu0.c.b16.cont [3/8] %v165, 128
  %259 = vxpose.xlu0.c.b16.cont [4/8] %v167, 128
  %260 = vxpose.xlu0.c.b16.cont [5/8] %v169, 128
  %261 = vxpose.xlu0.c.b16.cont [6/8] %v171, 128
  %262 = vxpose.xlu0.c.b16.cont [7/8] %v173, 128
  %263 = vxpose.xlu0.c.b16.end [8/8] %v175, 128
  %v264 = vpop.trf.xlu0
  %v265 = vpop.trf.xlu0
  %v266 = vpop.trf.xlu0
  %v267 = vpop.trf.xlu0
  %v268 = vpop.trf.xlu0
  %v269 = vpop.trf.xlu0
  %v270 = vpop.trf.xlu0
  %v271 = vpop.trf.xlu0
  %272 = vmatprep.subr.bf16.mxu0 0
  %273 = vmatpush1.bf16.msra.mxu0 1065369472
  %274 = vmatprep.subr.bf16.mxu0 0
  %275 = vmatpush1.bf16.msra.mxu0 1065369472
  %276 = vmatprep.subr.bf16.mxu0 0
  %277 = vmatpush1.bf16.msra.mxu0 1065369472
  %278 = vmatprep.subr.bf16.mxu0 0
  %279 = vmatpush1.bf16.msra.mxu0 1065369472
  %280 = vmatprep.subr.bf16.mxu0 0
  %281 = vmatpush1.bf16.msra.mxu0 1065369472
  %282 = vmatprep.subr.bf16.mxu0 0
  %283 = vmatpush1.bf16.msra.mxu0 1065369472
  %284 = vmatprep.subr.bf16.mxu0 0
  %285 = vmatpush1.bf16.msra.mxu0 1065369472
  %286 = vmatprep.subr.bf16.mxu0 0
  %287 = vmatpush1.bf16.msra.mxu0 1065369472
  %288 = vmatprep.subr.bf16.mxu0 0
  %289 = vmatpush1.bf16.msra.mxu0 1065369472
  %290 = vmatprep.subr.bf16.mxu0 0
  %291 = vmatpush1.bf16.msra.mxu0 1065369472
  %292 = vmatprep.subr.bf16.mxu0 0
  %293 = vmatpush1.bf16.msra.mxu0 1065369472
  %294 = vmatprep.subr.bf16.mxu0 0
  %295 = vmatpush1.bf16.msra.mxu0 1065369472
  %296 = vmatprep.subr.bf16.mxu0 0
  %297 = vmatpush1.bf16.msra.mxu0 1065369472
  %298 = vmatprep.subr.bf16.mxu0 0
  %299 = vmatpush1.bf16.msra.mxu0 1065369472
  %300 = vmatprep.subr.bf16.mxu0 0
  %301 = vmatpush1.bf16.msra.mxu0 1065369472
  %302 = vmatprep.subr.bf16.mxu0 0
  %303 = vmatpush1.bf16.msra.mxu0 1065369472
  %304 = vmatprep.mubr.bf16.mxu0 %v248
  %305 = vmatmul.mubr.bf16.gmra.mrb[0].mxu0 %v216
  %v306 = vpop.f32.mrb[0].mxu0
  %v307 = vadd.f32 1.0, %v306
  %v308 = vpop.f32.mrb[0].mxu0
  %v309 = vpop.f32.mrb[0].mxu0
  %v310 = vadd.f32 1.0, %v309
  %v311 = vpop.f32.mrb[0].mxu0
  %312 = vmatprep.mubr.bf16.mxu0 %v249
  %313 = vmatmul.mubr.bf16.gmra.mrb[0].mxu0 %v217
  %v314 = vpop.f32.mrb[0].mxu0
  %v315 = vadd.f32 1.0, %v314
  %v316 = vpop.f32.mrb[0].mxu0
  %v317 = vpop.f32.mrb[0].mxu0
  %v318 = vadd.f32 1.0, %v317
  %v319 = vpop.f32.mrb[0].mxu0
  %320 = vmatprep.mubr.bf16.mxu0 %v250
  %321 = vmatmul.mubr.bf16.gmra.mrb[0].mxu0 %v218
  %v322 = vpop.f32.mrb[0].mxu0
  %v323 = vadd.f32 1.0, %v322
  %v324 = vpop.f32.mrb[0].mxu0
  %v325 = vpop.f32.mrb[0].mxu0
  %v326 = vadd.f32 1.0, %v325
  %v327 = vpop.f32.mrb[0].mxu0
  %328 = vmatprep.mubr.bf16.mxu0 %v251
  %329 = vmatmul.mubr.bf16.gmra.mrb[0].mxu0 %v219
  %v330 = vpop.f32.mrb[0].mxu0
  %v331 = vadd.f32 1.0, %v330
  %v332 = vpop.f32.mrb[0].mxu0
  %v333 = vpop.f32.mrb[0].mxu0
  %v334 = vadd.f32 1.0, %v333
  %v335 = vpop.f32.mrb[0].mxu0
  %336 = vmatprep.mubr.bf16.mxu0 %v252
  %337 = vmatmul.mubr.bf16.gmra.mrb[0].mxu0 %v220
  %v338 = vpop.f32.mrb[0].mxu0
  %v339 = vadd.f32 1.0, %v338
  %v340 = vpop.f32.mrb[0].mxu0
  %v341 = vpop.f32.mrb[0].mxu0
  %v342 = vadd.f32 1.0, %v341
  %v343 = vpop.f32.mrb[0].mxu0
  %344 = vmatprep.mubr.bf16.mxu0 %v253
  %345 = vmatmul.mubr.bf16.gmra.mrb[0].mxu0 %v221
  %v346 = vpop.f32.mrb[0].mxu0
  %v347 = vadd.f32 1.0, %v346
  %v348 = vpop.f32.mrb[0].mxu0
  %v349 = vpop.f32.mrb[0].mxu0
  %v350 = vadd.f32 1.0, %v349
  %v351 = vpop.f32.mrb[0].mxu0
  %352 = vmatprep.mubr.bf16.mxu0 %v254
  %353 = vmatmul.mubr.bf16.gmra.mrb[0].mxu0 %v222
  %v354 = vpop.f32.mrb[0].mxu0
  %v355 = vadd.f32 1.0, %v354
  %v356 = vpop.f32.mrb[0].mxu0
  %v357 = vpop.f32.mrb[0].mxu0
  %v358 = vadd.f32 1.0, %v357
  %v359 = vpop.f32.mrb[0].mxu0
  %360 = vmatprep.mubr.bf16.mxu0 %v255
  %361 = vmatmul.mubr.bf16.gmra.mrb[0].mxu0 %v223
  %v362 = vpop.f32.mrb[0].mxu0
  %v363 = vadd.f32 1.0, %v362
  %v364 = vpop.f32.mrb[0].mxu0
  %v365 = vpop.f32.mrb[0].mxu0
  %v366 = vadd.f32 1.0, %v365
  %v367 = vpop.f32.mrb[0].mxu0
  %368 = vmatprep.mubr.bf16.mxu0 %v264
  %369 = vmatmul.mubr.bf16.gmra.mrb[0].mxu0 %v232
  %v370 = vpop.f32.mrb[0].mxu0
  %v371 = vadd.f32 1.0, %v370
  %v372 = vpop.f32.mrb[0].mxu0
  %v373 = vpop.f32.mrb[0].mxu0
  %v374 = vadd.f32 1.0, %v373
  %v375 = vpop.f32.mrb[0].mxu0
  %376 = vmatprep.mubr.bf16.mxu0 %v265
  %377 = vmatmul.mubr.bf16.gmra.mrb[0].mxu0 %v233
  %v378 = vpop.f32.mrb[0].mxu0
  %v379 = vadd.f32 1.0, %v378
  %v380 = vpop.f32.mrb[0].mxu0
  %v381 = vpop.f32.mrb[0].mxu0
  %v382 = vadd.f32 1.0, %v381
  %v383 = vpop.f32.mrb[0].mxu0
  %384 = vmatprep.mubr.bf16.mxu0 %v266
  %385 = vmatmul.mubr.bf16.gmra.mrb[0].mxu0 %v234
  %v386 = vpop.f32.mrb[0].mxu0
  %v387 = vadd.f32 1.0, %v386
  %v388 = vpop.f32.mrb[0].mxu0
  %v389 = vpop.f32.mrb[0].mxu0
  %v390 = vadd.f32 1.0, %v389
  %v391 = vpop.f32.mrb[0].mxu0
  %392 = vmatprep.mubr.bf16.mxu0 %v267
  %393 = vmatmul.mubr.bf16.gmra.mrb[0].mxu0 %v235
  %v394 = vpop.f32.mrb[0].mxu0
  %v395 = vadd.f32 1.0, %v394
  %v396 = vpop.f32.mrb[0].mxu0
  %v397 = vpop.f32.mrb[0].mxu0
  %v398 = vadd.f32 1.0, %v397
  %v399 = vpop.f32.mrb[0].mxu0
  %400 = vmatprep.mubr.bf16.mxu0 %v268
  %401 = vmatmul.mubr.bf16.gmra.mrb[0].mxu0 %v236
  %v402 = vpop.f32.mrb[0].mxu0
  %v403 = vadd.f32 1.0, %v402
  %v404 = vpop.f32.mrb[0].mxu0
  %v405 = vpop.f32.mrb[0].mxu0
  %v406 = vadd.f32 1.0, %v405
  %v407 = vpop.f32.mrb[0].mxu0
  %408 = vmatprep.mubr.bf16.mxu0 %v269
  %409 = vmatmul.mubr.bf16.gmra.mrb[0].mxu0 %v237
  %v410 = vpop.f32.mrb[0].mxu0
  %v411 = vadd.f32 1.0, %v410
  %v412 = vpop.f32.mrb[0].mxu0
  %v413 = vpop.f32.mrb[0].mxu0
  %v414 = vadd.f32 1.0, %v413
  %v415 = vpop.f32.mrb[0].mxu0
  %416 = vmatprep.mubr.bf16.mxu0 %v270
  %417 = vmatmul.mubr.bf16.gmra.mrb[0].mxu0 %v238
  %v418 = vpop.f32.mrb[0].mxu0
  %v419 = vadd.f32 1.0, %v418
  %v420 = vpop.f32.mrb[0].mxu0
  %v421 = vpop.f32.mrb[0].mxu0
  %v422 = vadd.f32 1.0, %v421
  %v423 = vpop.f32.mrb[0].mxu0
  %424 = vmatprep.mubr.bf16.mxu0 %v271
  %425 = vmatmul.mubr.bf16.gmra.mrb[0].mxu0 %v239
  %v426 = vpop.f32.mrb[0].mxu0
  %v427 = vadd.f32 1.0, %v426
  %v428 = vpop.f32.mrb[0].mxu0
  %v429 = vpop.f32.mrb[0].mxu0
  %v430 = vadd.f32 1.0, %v429
  %v431 = vpop.f32.mrb[0].mxu0
  %432 = vdwg.mxu0
  %v433 = vrsqrt.pop %v307
  %v434 = vrsqrt.pop %v310
  %v435 = vrsqrt.pop %v315
  %v436 = vrsqrt.pop %v318
  %v437 = vrsqrt.pop %v323
  %v438 = vrsqrt.pop %v326
  %v439 = vrsqrt.pop %v331
  %v440 = vrsqrt.pop %v334
  %v441 = vrsqrt.pop %v339
  %v442 = vrsqrt.pop %v342
  %v443 = vrsqrt.pop %v347
  %v444 = vrsqrt.pop %v350
  %v445 = vrsqrt.pop %v355
  %v446 = vrsqrt.pop %v358
  %v447 = vrsqrt.pop %v363
  %v448 = vrsqrt.pop %v366
  %v449 = vrsqrt.pop %v371
  %v450 = vrsqrt.pop %v374
  %v451 = vrsqrt.pop %v379
  %v452 = vrsqrt.pop %v382
  %v453 = vrsqrt.pop %v387
  %v454 = vrsqrt.pop %v390
  %v455 = vrsqrt.pop %v395
  %v456 = vrsqrt.pop %v398
  %v457 = vrsqrt.pop %v403
  %v458 = vrsqrt.pop %v406
  %v459 = vrsqrt.pop %v411
  %v460 = vrsqrt.pop %v414
  %v461 = vrsqrt.pop %v419
  %v462 = vrsqrt.pop %v422
  %v463 = vrsqrt.pop %v427
  %v464 = vrsqrt.pop %v430
  %v465 = vld [vmem:[%s1] sm:$0xff]
  %v466 = vld [vmem:[%s1 + $0x8] sm:$0xff]
  %v467 = vld [vmem:[%s1 + $0x10] sm:$0xff]
  %v468 = vld [vmem:[%s1 + $0x18] sm:$0xff]
  %v469 = vld [vmem:[%s1 + $0x20] sm:$0xff]
  %v470 = vld [vmem:[%s1 + $0x28] sm:$0xff]
  %v471 = vld [vmem:[%s1 + $0x30] sm:$0xff]
  %v472 = vld [vmem:[%s1 + $0x38] sm:$0xff]
  %v473 = vld [vmem:[%s1 + $0x40] sm:$0xff]
  %v474 = vld [vmem:[%s1 + $0x48] sm:$0xff]
  %v475 = vld [vmem:[%s1 + $0x50] sm:$0xff]
  %v476 = vld [vmem:[%s1 + $0x58] sm:$0xff]
  %v477 = vld [vmem:[%s1 + $0x60] sm:$0xff]
  %v478 = vld [vmem:[%s1 + $0x68] sm:$0xff]
  %v479 = vld [vmem:[%s1 + $0x70] sm:$0xff]
  %v480 = vld [vmem:[%s1 + $0x78] sm:$0xff]
  %v481 = vld [vmem:[%s1 + $0x80] sm:$0xff]
  %v482 = vld [vmem:[%s1 + $0x88] sm:$0xff]
  %v483 = vld [vmem:[%s1 + $0x90] sm:$0xff]
  %v484 = vld [vmem:[%s1 + $0x98] sm:$0xff]
  %v485 = vld [vmem:[%s1 + $0xa0] sm:$0xff]
  %v486 = vld [vmem:[%s1 + $0xa8] sm:$0xff]
  %v487 = vld [vmem:[%s1 + $0xb0] sm:$0xff]
  %v488 = vld [vmem:[%s1 + $0xb8] sm:$0xff]
  %v489 = vld [vmem:[%s1 + $0xc0] sm:$0xff]
  %v490 = vld [vmem:[%s1 + $0xc8] sm:$0xff]
  %v491 = vld [vmem:[%s1 + $0xd0] sm:$0xff]
  %v492 = vld [vmem:[%s1 + $0xd8] sm:$0xff]
  %v493 = vld [vmem:[%s1 + $0xe0] sm:$0xff]
  %v494 = vld [vmem:[%s1 + $0xe8] sm:$0xff]
  %v495 = vld [vmem:[%s1 + $0xf0] sm:$0xff]
  %v496 = vld [vmem:[%s1 + $0xf8] sm:$0xff]
  %498 = vset.pattern.permute.xlu0 0
  %499 = vperm.xlu0 %498, %v433
  %v500 = vpop.permute.xlu0 %499
  %503 = vset.pattern.permute.xlu0 0
  %504 = vperm.xlu0 %503, %v434
  %v505 = vpop.permute.xlu0 %504
  %508 = vset.pattern.permute.xlu0 0
  %509 = vperm.xlu0 %508, %v435
  %v510 = vpop.permute.xlu0 %509
  %513 = vset.pattern.permute.xlu0 0
  %514 = vperm.xlu0 %513, %v436
  %v515 = vpop.permute.xlu0 %514
  %518 = vset.pattern.permute.xlu0 0
  %519 = vperm.xlu0 %518, %v437
  %v520 = vpop.permute.xlu0 %519
  %523 = vset.pattern.permute.xlu0 0
  %524 = vperm.xlu0 %523, %v438
  %v525 = vpop.permute.xlu0 %524
  %528 = vset.pattern.permute.xlu0 0
  %529 = vperm.xlu0 %528, %v439
  %v530 = vpop.permute.xlu0 %529
  %533 = vset.pattern.permute.xlu0 0
  %534 = vperm.xlu0 %533, %v440
  %v535 = vpop.permute.xlu0 %534
  %538 = vset.pattern.permute.xlu0 0
  %539 = vperm.xlu0 %538, %v441
  %v540 = vpop.permute.xlu0 %539
  %543 = vset.pattern.permute.xlu0 0
  %544 = vperm.xlu0 %543, %v442
  %v545 = vpop.permute.xlu0 %544
  %548 = vset.pattern.permute.xlu0 0
  %549 = vperm.xlu0 %548, %v443
  %v550 = vpop.permute.xlu0 %549
  %553 = vset.pattern.permute.xlu0 0
  %554 = vperm.xlu0 %553, %v444
  %v555 = vpop.permute.xlu0 %554
  %558 = vset.pattern.permute.xlu0 0
  %559 = vperm.xlu0 %558, %v445
  %v560 = vpop.permute.xlu0 %559
  %563 = vset.pattern.permute.xlu0 0
  %564 = vperm.xlu0 %563, %v446
  %v565 = vpop.permute.xlu0 %564
  %568 = vset.pattern.permute.xlu0 0
  %569 = vperm.xlu0 %568, %v447
  %v570 = vpop.permute.xlu0 %569
  %573 = vset.pattern.permute.xlu0 0
  %574 = vperm.xlu0 %573, %v448
  %v575 = vpop.permute.xlu0 %574
  %578 = vset.pattern.permute.xlu0 0
  %579 = vperm.xlu0 %578, %v449
  %v580 = vpop.permute.xlu0 %579
  %583 = vset.pattern.permute.xlu0 0
  %584 = vperm.xlu0 %583, %v450
  %v585 = vpop.permute.xlu0 %584
  %588 = vset.pattern.permute.xlu0 0
  %589 = vperm.xlu0 %588, %v451
  %v590 = vpop.permute.xlu0 %589
  %593 = vset.pattern.permute.xlu0 0
  %594 = vperm.xlu0 %593, %v452
  %v595 = vpop.permute.xlu0 %594
  %598 = vset.pattern.permute.xlu0 0
  %599 = vperm.xlu0 %598, %v453
  %v600 = vpop.permute.xlu0 %599
  %603 = vset.pattern.permute.xlu0 0
  %604 = vperm.xlu0 %603, %v454
  %v605 = vpop.permute.xlu0 %604
  %608 = vset.pattern.permute.xlu0 0
  %609 = vperm.xlu0 %608, %v455
  %v610 = vpop.permute.xlu0 %609
  %613 = vset.pattern.permute.xlu0 0
  %614 = vperm.xlu0 %613, %v456
  %v615 = vpop.permute.xlu0 %614
  %618 = vset.pattern.permute.xlu0 0
  %619 = vperm.xlu0 %618, %v457
  %v620 = vpop.permute.xlu0 %619
  %623 = vset.pattern.permute.xlu0 0
  %624 = vperm.xlu0 %623, %v458
  %v625 = vpop.permute.xlu0 %624
  %628 = vset.pattern.permute.xlu0 0
  %629 = vperm.xlu0 %628, %v459
  %v630 = vpop.permute.xlu0 %629
  %633 = vset.pattern.permute.xlu0 0
  %634 = vperm.xlu0 %633, %v460
  %v635 = vpop.permute.xlu0 %634
  %638 = vset.pattern.permute.xlu0 0
  %639 = vperm.xlu0 %638, %v461
  %v640 = vpop.permute.xlu0 %639
  %643 = vset.pattern.permute.xlu0 0
  %644 = vperm.xlu0 %643, %v462
  %v645 = vpop.permute.xlu0 %644
  %648 = vset.pattern.permute.xlu0 0
  %649 = vperm.xlu0 %648, %v463
  %v650 = vpop.permute.xlu0 %649
  %653 = vset.pattern.permute.xlu0 0
  %654 = vperm.xlu0 %653, %v464
  %v655 = vpop.permute.xlu0 %654
  %v657 = vmul.f32 %v500, %v465
  %v658 = vmul.f32 %v505, %v466
  %v659 = vmul.f32 %v510, %v467
  %v660 = vmul.f32 %v515, %v468
  %v661 = vmul.f32 %v520, %v469
  %v662 = vmul.f32 %v525, %v470
  %v663 = vmul.f32 %v530, %v471
  %v664 = vmul.f32 %v535, %v472
  %v665 = vmul.f32 %v540, %v473
  %v666 = vmul.f32 %v545, %v474
  %v667 = vmul.f32 %v550, %v475
  %v668 = vmul.f32 %v555, %v476
  %v669 = vmul.f32 %v560, %v477
  %v670 = vmul.f32 %v565, %v478
  %v671 = vmul.f32 %v570, %v479
  %v672 = vmul.f32 %v575, %v480
  %v673 = vmul.f32 %v580, %v481
  %v674 = vmul.f32 %v585, %v482
  %v675 = vmul.f32 %v590, %v483
  %v676 = vmul.f32 %v595, %v484
  %v677 = vmul.f32 %v600, %v485
  %v678 = vmul.f32 %v605, %v486
  %v679 = vmul.f32 %v610, %v487
  %v680 = vmul.f32 %v615, %v488
  %v681 = vmul.f32 %v620, %v489
  %v682 = vmul.f32 %v625, %v490
  %v683 = vmul.f32 %v630, %v491
  %v684 = vmul.f32 %v635, %v492
  %v685 = vmul.f32 %v640, %v493
  %v686 = vmul.f32 %v645, %v494
  %v687 = vmul.f32 %v650, %v495
  %v688 = vmul.f32 %v655, %v496
  %v689 = vpack.c.bf16 %v658, %v657
  %v690 = vpack.c.bf16 %v660, %v659
  %v691 = vpack.c.bf16 %v662, %v661
  %v692 = vpack.c.bf16 %v664, %v663
  %v693 = vpack.c.bf16 %v666, %v665
  %v694 = vpack.c.bf16 %v668, %v667
  %v695 = vpack.c.bf16 %v670, %v669
  %v696 = vpack.c.bf16 %v672, %v671
  %v697 = vpack.c.bf16 %v674, %v673
  %v698 = vpack.c.bf16 %v676, %v675
  %v699 = vpack.c.bf16 %v678, %v677
  %v700 = vpack.c.bf16 %v680, %v679
  %v701 = vpack.c.bf16 %v682, %v681
  %v702 = vpack.c.bf16 %v684, %v683
  %v703 = vpack.c.bf16 %v686, %v685
  %v704 = vpack.c.bf16 %v688, %v687
  %705 = vmatprep.subr.bf16.mxu0 0
  %706 = vmatpush1.bf16.msra.mxu0 %v689
  %707 = vmatprep.subr.bf16.mxu0 0
  %708 = vmatpush1.bf16.msra.mxu0 %v690
  %709 = vmatprep.subr.bf16.mxu0 0
  %710 = vmatpush1.bf16.msra.mxu0 %v691
  %711 = vmatprep.subr.bf16.mxu0 0
  %712 = vmatpush1.bf16.msra.mxu0 %v692
  %713 = vmatprep.subr.bf16.mxu0 0
  %714 = vmatpush1.bf16.msra.mxu0 %v693
  %715 = vmatprep.subr.bf16.mxu0 0
  %716 = vmatpush1.bf16.msra.mxu0 %v694
  %717 = vmatprep.subr.bf16.mxu0 0
  %718 = vmatpush1.bf16.msra.mxu0 %v695
  %719 = vmatprep.subr.bf16.mxu0 0
  %720 = vmatpush1.bf16.msra.mxu0 %v696
  %721 = vmatprep.subr.bf16.mxu0 0
  %722 = vmatpush1.bf16.msra.mxu0 %v697
  %723 = vmatprep.subr.bf16.mxu0 0
  %724 = vmatpush1.bf16.msra.mxu0 %v698
  %725 = vmatprep.subr.bf16.mxu0 0
  %726 = vmatpush1.bf16.msra.mxu0 %v699
  %727 = vmatprep.subr.bf16.mxu0 0
  %728 = vmatpush1.bf16.msra.mxu0 %v700
  %729 = vmatprep.subr.bf16.mxu0 0
  %730 = vmatpush1.bf16.msra.mxu0 %v701
  %731 = vmatprep.subr.bf16.mxu0 0
  %732 = vmatpush1.bf16.msra.mxu0 %v702
  %733 = vmatprep.subr.bf16.mxu0 0
  %734 = vmatpush1.bf16.msra.mxu0 %v703
  %735 = vmatprep.subr.bf16.mxu0 0
  %736 = vmatpush1.bf16.msra.mxu0 %v704
  %737 = vmatprep.mubr.bf16.mxu0 %v145
  %738 = vmatmul.mubr.bf16.gmra.mrb[0].mxu0 %v144
  %v739 = vpop.f32.mrb[0].mxu0
  %v740 = vadd.f32 %v657, %v739
  %v741 = vpop.f32.mrb[0].mxu0
  %v742 = vpop.f32.mrb[0].mxu0
  %v743 = vadd.f32 %v658, %v742
  %v744 = vpop.f32.mrb[0].mxu0
  %745 = vmatprep.mubr.bf16.mxu0 %v147
  %746 = vmatmul.mubr.bf16.gmra.mrb[0].mxu0 %v146
  %v747 = vpop.f32.mrb[0].mxu0
  %v748 = vadd.f32 %v659, %v747
  %v749 = vpop.f32.mrb[0].mxu0
  %v750 = vpop.f32.mrb[0].mxu0
  %v751 = vadd.f32 %v660, %v750
  %v752 = vpop.f32.mrb[0].mxu0
  %753 = vmatprep.mubr.bf16.mxu0 %v149
  %754 = vmatmul.mubr.bf16.gmra.mrb[0].mxu0 %v148
  %v755 = vpop.f32.mrb[0].mxu0
  %v756 = vadd.f32 %v661, %v755
  %v757 = vpop.f32.mrb[0].mxu0
  %v758 = vpop.f32.mrb[0].mxu0
  %v759 = vadd.f32 %v662, %v758
  %v760 = vpop.f32.mrb[0].mxu0
  %761 = vmatprep.mubr.bf16.mxu0 %v151
  %762 = vmatmul.mubr.bf16.gmra.mrb[0].mxu0 %v150
  %v763 = vpop.f32.mrb[0].mxu0
  %v764 = vadd.f32 %v663, %v763
  %v765 = vpop.f32.mrb[0].mxu0
  %v766 = vpop.f32.mrb[0].mxu0
  %v767 = vadd.f32 %v664, %v766
  %v768 = vpop.f32.mrb[0].mxu0
  %769 = vmatprep.mubr.bf16.mxu0 %v153
  %770 = vmatmul.mubr.bf16.gmra.mrb[0].mxu0 %v152
  %v771 = vpop.f32.mrb[0].mxu0
  %v772 = vadd.f32 %v665, %v771
  %v773 = vpop.f32.mrb[0].mxu0
  %v774 = vpop.f32.mrb[0].mxu0
  %v775 = vadd.f32 %v666, %v774
  %v776 = vpop.f32.mrb[0].mxu0
  %777 = vmatprep.mubr.bf16.mxu0 %v155
  %778 = vmatmul.mubr.bf16.gmra.mrb[0].mxu0 %v154
  %v779 = vpop.f32.mrb[0].mxu0
  %v780 = vadd.f32 %v667, %v779
  %v781 = vpop.f32.mrb[0].mxu0
  %v782 = vpop.f32.mrb[0].mxu0
  %v783 = vadd.f32 %v668, %v782
  %v784 = vpop.f32.mrb[0].mxu0
  %785 = vmatprep.mubr.bf16.mxu0 %v157
  %786 = vmatmul.mubr.bf16.gmra.mrb[0].mxu0 %v156
  %v787 = vpop.f32.mrb[0].mxu0
  %v788 = vadd.f32 %v669, %v787
  %v789 = vpop.f32.mrb[0].mxu0
  %v790 = vpop.f32.mrb[0].mxu0
  %v791 = vadd.f32 %v670, %v790
  %v792 = vpop.f32.mrb[0].mxu0
  %793 = vmatprep.mubr.bf16.mxu0 %v159
  %794 = vmatmul.mubr.bf16.gmra.mrb[0].mxu0 %v158
  %v795 = vpop.f32.mrb[0].mxu0
  %v796 = vadd.f32 %v671, %v795
  %v797 = vpop.f32.mrb[0].mxu0
  %v798 = vpop.f32.mrb[0].mxu0
  %v799 = vadd.f32 %v672, %v798
  %v800 = vpop.f32.mrb[0].mxu0
  %801 = vmatprep.mubr.bf16.mxu0 %v161
  %802 = vmatmul.mubr.bf16.gmra.mrb[0].mxu0 %v160
  %v803 = vpop.f32.mrb[0].mxu0
  %v804 = vadd.f32 %v673, %v803
  %v805 = vpop.f32.mrb[0].mxu0
  %v806 = vpop.f32.mrb[0].mxu0
  %v807 = vadd.f32 %v674, %v806
  %v808 = vpop.f32.mrb[0].mxu0
  %809 = vmatprep.mubr.bf16.mxu0 %v163
  %810 = vmatmul.mubr.bf16.gmra.mrb[0].mxu0 %v162
  %v811 = vpop.f32.mrb[0].mxu0
  %v812 = vadd.f32 %v675, %v811
  %v813 = vpop.f32.mrb[0].mxu0
  %v814 = vpop.f32.mrb[0].mxu0
  %v815 = vadd.f32 %v676, %v814
  %v816 = vpop.f32.mrb[0].mxu0
  %817 = vmatprep.mubr.bf16.mxu0 %v165
  %818 = vmatmul.mubr.bf16.gmra.mrb[0].mxu0 %v164
  %v819 = vpop.f32.mrb[0].mxu0
  %v820 = vadd.f32 %v677, %v819
  %v821 = vpop.f32.mrb[0].mxu0
  %v822 = vpop.f32.mrb[0].mxu0
  %v823 = vadd.f32 %v678, %v822
  %v824 = vpop.f32.mrb[0].mxu0
  %825 = vmatprep.mubr.bf16.mxu0 %v167
  %826 = vmatmul.mubr.bf16.gmra.mrb[0].mxu0 %v166
  %v827 = vpop.f32.mrb[0].mxu0
  %v828 = vadd.f32 %v679, %v827
  %v829 = vpop.f32.mrb[0].mxu0
  %v830 = vpop.f32.mrb[0].mxu0
  %v831 = vadd.f32 %v680, %v830
  %v832 = vpop.f32.mrb[0].mxu0
  %833 = vmatprep.mubr.bf16.mxu0 %v169
  %834 = vmatmul.mubr.bf16.gmra.mrb[0].mxu0 %v168
  %v835 = vpop.f32.mrb[0].mxu0
  %v836 = vadd.f32 %v681, %v835
  %v837 = vpop.f32.mrb[0].mxu0
  %v838 = vpop.f32.mrb[0].mxu0
  %v839 = vadd.f32 %v682, %v838
  %v840 = vpop.f32.mrb[0].mxu0
  %841 = vmatprep.mubr.bf16.mxu0 %v171
  %842 = vmatmul.mubr.bf16.gmra.mrb[0].mxu0 %v170
  %v843 = vpop.f32.mrb[0].mxu0
  %v844 = vadd.f32 %v683, %v843
  %v845 = vpop.f32.mrb[0].mxu0
  %v846 = vpop.f32.mrb[0].mxu0
  %v847 = vadd.f32 %v684, %v846
  %v848 = vpop.f32.mrb[0].mxu0
  %849 = vmatprep.mubr.bf16.mxu0 %v173
  %850 = vmatmul.mubr.bf16.gmra.mrb[0].mxu0 %v172
  %v851 = vpop.f32.mrb[0].mxu0
  %v852 = vadd.f32 %v685, %v851
  %v853 = vpop.f32.mrb[0].mxu0
  %v854 = vpop.f32.mrb[0].mxu0
  %v855 = vadd.f32 %v686, %v854
  %v856 = vpop.f32.mrb[0].mxu0
  %857 = vmatprep.mubr.bf16.mxu0 %v175
  %858 = vmatmul.mubr.bf16.gmra.mrb[0].mxu0 %v174
  %v859 = vpop.f32.mrb[0].mxu0
  %v860 = vadd.f32 %v687, %v859
  %v861 = vpop.f32.mrb[0].mxu0
  %v862 = vpop.f32.mrb[0].mxu0
  %v863 = vadd.f32 %v688, %v862
  %v864 = vpop.f32.mrb[0].mxu0
  %865 = vdwg.mxu0
  %v866 = vmul.f32 %v500, %v740
  %v867 = vmul.f32 %v505, %v743
  %v868 = vmul.f32 %v510, %v748
  %v869 = vmul.f32 %v515, %v751
  %v870 = vmul.f32 %v520, %v756
  %v871 = vmul.f32 %v525, %v759
  %v872 = vmul.f32 %v530, %v764
  %v873 = vmul.f32 %v535, %v767
  %v874 = vmul.f32 %v540, %v772
  %v875 = vmul.f32 %v545, %v775
  %v876 = vmul.f32 %v550, %v780
  %v877 = vmul.f32 %v555, %v783
  %v878 = vmul.f32 %v560, %v788
  %v879 = vmul.f32 %v565, %v791
  %v880 = vmul.f32 %v570, %v796
  %v881 = vmul.f32 %v575, %v799
  %v882 = vmul.f32 %v580, %v804
  %v883 = vmul.f32 %v585, %v807
  %v884 = vmul.f32 %v590, %v812
  %v885 = vmul.f32 %v595, %v815
  %v886 = vmul.f32 %v600, %v820
  %v887 = vmul.f32 %v605, %v823
  %v888 = vmul.f32 %v610, %v828
  %v889 = vmul.f32 %v615, %v831
  %v890 = vmul.f32 %v620, %v836
  %v891 = vmul.f32 %v625, %v839
  %v892 = vmul.f32 %v630, %v844
  %v893 = vmul.f32 %v635, %v847
  %v894 = vmul.f32 %v640, %v852
  %v895 = vmul.f32 %v645, %v855
  %v896 = vmul.f32 %v650, %v860
  %v897 = vmul.f32 %v655, %v863
  %v898 = vld [vmem:[%s2] sm:$0x1]
  %v900 = vlaneseq
  %v901 = vshrl.u32 %v900, 7
  %v902 = vsub.s32 0, %v901
  %v903 = vrot.slane %v898, %v902
  %v905 = vadd.f32 %v866, %v903
  %v906 = vadd.f32 %v867, %v903
  %v907 = vadd.f32 %v868, %v903
  %v908 = vadd.f32 %v869, %v903
  %v909 = vadd.f32 %v870, %v903
  %v910 = vadd.f32 %v871, %v903
  %v911 = vadd.f32 %v872, %v903
  %v912 = vadd.f32 %v873, %v903
  %v913 = vadd.f32 %v874, %v903
  %v914 = vadd.f32 %v875, %v903
  %v915 = vadd.f32 %v876, %v903
  %v916 = vadd.f32 %v877, %v903
  %v917 = vadd.f32 %v878, %v903
  %v918 = vadd.f32 %v879, %v903
  %v919 = vadd.f32 %v880, %v903
  %v920 = vadd.f32 %v881, %v903
  %v921 = vadd.f32 %v882, %v903
  %v922 = vadd.f32 %v883, %v903
  %v923 = vadd.f32 %v884, %v903
  %v924 = vadd.f32 %v885, %v903
  %v925 = vadd.f32 %v886, %v903
  %v926 = vadd.f32 %v887, %v903
  %v927 = vadd.f32 %v888, %v903
  %v928 = vadd.f32 %v889, %v903
  %v929 = vadd.f32 %v890, %v903
  %v930 = vadd.f32 %v891, %v903
  %v931 = vadd.f32 %v892, %v903
  %v932 = vadd.f32 %v893, %v903
  %v933 = vadd.f32 %v894, %v903
  %v934 = vadd.f32 %v895, %v903
  %v935 = vadd.f32 %v896, %v903
  %v936 = vadd.f32 %v897, %v903
  %v937 = vmax.f32 %v905, 0.0
  %v938 = vmax.f32 %v906, 0.0
  %v939 = vmax.f32 %v907, 0.0
  %v940 = vmax.f32 %v908, 0.0
  %v941 = vmax.f32 %v909, 0.0
  %v942 = vmax.f32 %v910, 0.0
  %v943 = vmax.f32 %v911, 0.0
  %v944 = vmax.f32 %v912, 0.0
  %v945 = vmax.f32 %v913, 0.0
  %v946 = vmax.f32 %v914, 0.0
  %v947 = vmax.f32 %v915, 0.0
  %v948 = vmax.f32 %v916, 0.0
  %v949 = vmax.f32 %v917, 0.0
  %v950 = vmax.f32 %v918, 0.0
  %v951 = vmax.f32 %v919, 0.0
  %v952 = vmax.f32 %v920, 0.0
  %v953 = vmax.f32 %v921, 0.0
  %v954 = vmax.f32 %v922, 0.0
  %v955 = vmax.f32 %v923, 0.0
  %v956 = vmax.f32 %v924, 0.0
  %v957 = vmax.f32 %v925, 0.0
  %v958 = vmax.f32 %v926, 0.0
  %v959 = vmax.f32 %v927, 0.0
  %v960 = vmax.f32 %v928, 0.0
  %v961 = vmax.f32 %v929, 0.0
  %v962 = vmax.f32 %v930, 0.0
  %v963 = vmax.f32 %v931, 0.0
  %v964 = vmax.f32 %v932, 0.0
  %v965 = vmax.f32 %v933, 0.0
  %v966 = vmax.f32 %v934, 0.0
  %v967 = vmax.f32 %v935, 0.0
  %v968 = vmax.f32 %v936, 0.0
  %969 = vst [vmem:[%s3] sm:$0xff] %v937
  %970 = vst [vmem:[%s3 + $0x8] sm:$0xff] %v938
  %971 = vst [vmem:[%s3 + $0x10] sm:$0xff] %v939
  %972 = vst [vmem:[%s3 + $0x18] sm:$0xff] %v940
  %973 = vst [vmem:[%s3 + $0x20] sm:$0xff] %v941
  %974 = vst [vmem:[%s3 + $0x28] sm:$0xff] %v942
  %975 = vst [vmem:[%s3 + $0x30] sm:$0xff] %v943
  %976 = vst [vmem:[%s3 + $0x38] sm:$0xff] %v944
  %977 = vst [vmem:[%s3 + $0x40] sm:$0xff] %v945
  %978 = vst [vmem:[%s3 + $0x48] sm:$0xff] %v946
  %979 = vst [vmem:[%s3 + $0x50] sm:$0xff] %v947
  %980 = vst [vmem:[%s3 + $0x58] sm:$0xff] %v948
  %981 = vst [vmem:[%s3 + $0x60] sm:$0xff] %v949
  %982 = vst [vmem:[%s3 + $0x68] sm:$0xff] %v950
  %983 = vst [vmem:[%s3 + $0x70] sm:$0xff] %v951
  %984 = vst [vmem:[%s3 + $0x78] sm:$0xff] %v952
  %985 = vst [vmem:[%s3 + $0x80] sm:$0xff] %v953
  %986 = vst [vmem:[%s3 + $0x88] sm:$0xff] %v954
  %987 = vst [vmem:[%s3 + $0x90] sm:$0xff] %v955
  %988 = vst [vmem:[%s3 + $0x98] sm:$0xff] %v956
  %989 = vst [vmem:[%s3 + $0xa0] sm:$0xff] %v957
  %990 = vst [vmem:[%s3 + $0xa8] sm:$0xff] %v958
  %991 = vst [vmem:[%s3 + $0xb0] sm:$0xff] %v959
  %992 = vst [vmem:[%s3 + $0xb8] sm:$0xff] %v960
  %993 = vst [vmem:[%s3 + $0xc0] sm:$0xff] %v961
  %994 = vst [vmem:[%s3 + $0xc8] sm:$0xff] %v962
  %995 = vst [vmem:[%s3 + $0xd0] sm:$0xff] %v963
  %996 = vst [vmem:[%s3 + $0xd8] sm:$0xff] %v964
  %997 = vst [vmem:[%s3 + $0xe0] sm:$0xff] %v965
  %998 = vst [vmem:[%s3 + $0xe8] sm:$0xff] %v966
  %999 = vst [vmem:[%s3 + $0xf0] sm:$0xff] %v967
  %1000 = vst [vmem:[%s3 + $0xf8] sm:$0xff] %v968
  // Predicated region
  $region14: #{my_model1_forward.1} parent=0 // pred_check
    _
  $region15: #{my_model1_forward.1} parent=0 // pred_check_branch
    %1002 = sbr.rel (0) target = $region17
  $region16: #{my_model1_forward.1} parent=0 // pred_region
    _
  $region17: #{my_model1_forward.1} parent=0 // pred_fallthru
    _
  // Predicated region
  $region18: #{my_model1_forward.1} parent=0 // pred_check
    _
  $region19: #{my_model1_forward.1} parent=0 // pred_check_branch
    %1004 = sbr.rel (0) target = $region21
  $region20: #{my_model1_forward.1} parent=0 // pred_region
    _
  $region21: #{my_model1_forward.1} parent=0 // pred_fallthru
    _

</llo_original>
